<compile_context>
chip_gen: v5e
topology: v5e:2x2
jax: 0.10.0
libtpu: 0.0.40
codegen_flags: <defaults>
</compile_context>

<pallas_src>
import jax
import jax.numpy as jnp
from jax.experimental import pallas as pl
from jax.experimental.pallas import tpu as pltpu


def _round_up(x, m):
    return ((x + m - 1) // m) * m


def _cdiv(a, b):
    return (a + b - 1) // b


def _vmem_limit_bytes():
    """Per-generation scoped VMEM budget (leave headroom under the physical cap)."""
    try:
        cap = pltpu.get_tpu_info().vmem_capacity_bytes
    except Exception:
        cap = 64 * 1024 * 1024  # be conservative (v7x-sized) if query fails
    if cap <= 64 * 1024 * 1024:
        return 48 * 1024 * 1024   # v7x: 64 MiB physical
    return 100 * 1024 * 1024      # v5e / v6e: 128 MiB physical


def _pick_tk(E, tk_max=512):
    """Largest lane-aligned divisor of E <= tk_max (prefer 256 for the 256-wide MXU)."""
    for align in (256, 128):
        t = (tk_max // align) * align
        while t >= align:
            if E % t == 0:
                return t
            t -= align
    return E  # awkward E: keep a single K step (best effort)


# ---------------------------------------------------------------------------
# Kernels
# ---------------------------------------------------------------------------
def _linear_kernel_fused(x_ref, w_ref, b_ref, o_ref):
    # Single K step: no scratch, no read-modify-write on the output tile.
    acc = jnp.dot(x_ref[...], w_ref[...], preferred_element_type=jnp.float32)
    o_ref[...] = (acc + b_ref[...].astype(jnp.float32)).astype(o_ref.dtype)


def _linear_kernel_acc(x_ref, w_ref, b_ref, o_ref, acc_ref):
    # Chunked reduction: f32 accumulator resident across the (innermost) K axis.
    k = pl.program_id(2)

    @pl.when(k == 0)
    def _init():
        acc_ref[...] = jnp.zeros_like(acc_ref)

    acc_ref[...] += jnp.dot(
        x_ref[...], w_ref[...], preferred_element_type=jnp.float32
    )

    @pl.when(k == pl.num_programs(2) - 1)
    def _finalize():
        o_ref[...] = (
            acc_ref[...] + b_ref[...].astype(jnp.float32)
        ).astype(o_ref.dtype)


# ---------------------------------------------------------------------------
# One-time parameter preparation (done at "init", not per forward call)
# ---------------------------------------------------------------------------
def prepare_params(weight, bias, *, compute_dtype=jnp.bfloat16):
    """Convert PyTorch nn.Linear params to kernel layout.

    weight: [V, E] (nn.Linear.weight), bias: [V]
    Returns dict with:
      weight_t: [E, V_pad] compute_dtype (bf16 by default), V_pad = round_up(V, 128)
      bias:     [1, V_pad] f32 (bias is added in f32 after the accumulator)
      vocab_size: V
    """
    weight = jnp.asarray(weight)
    bias = jnp.asarray(bias)
    V, E = weight.shape
    V_pad = _round_up(V, 128)
    w_t = weight.T.astype(compute_dtype)              # [E, V]
    b = bias.astype(jnp.float32).reshape(1, V)
    if V_pad != V:
        w_t = jnp.pad(w_t, ((0, 0), (0, V_pad - V)))
        b = jnp.pad(b, ((0, 0), (0, V_pad - V)))
    return {"weight_t": w_t, "bias": b, "vocab_size": int(V)}


# ---------------------------------------------------------------------------
# Forward
# ---------------------------------------------------------------------------
def fine_predictor_forward(x, params, *, out_dtype=None):
    """FinePredictor.forward: y = x @ W^T + b.

    x: [B, S, E] -> returns [B, S, V] in out_dtype (default: x.dtype).
    """
    weight_t = params["weight_t"]          # [E, V_pad], compute dtype (bf16)
    bias2d = params["bias"]                # [1, V_pad], f32
    V = params["vocab_size"]
    B, S, E = x.shape
    E_w, V_pad = weight_t.shape
    assert E_w == E, "weight_t must be [E, V_pad]"
    M = B * S

    out_dtype = jnp.dtype(out_dtype or x.dtype)
    compute_dtype = weight_t.dtype
    c_item = jnp.dtype(compute_dtype).itemsize
    o_item = out_dtype.itemsize

    x2d = x.reshape(M, E).astype(compute_dtype)

    vmem_limit = _vmem_limit_bytes()
    budget = int(vmem_limit * 0.85)

    def _need(tm_, tn_, tk_, acc_):
        n = 2 * tm_ * tk_ * c_item       # activations (double-buffered)
        n += 2 * tk_ * tn_ * c_item      # weight
        n += 2 * tn_ * 4                 # bias (f32)
        n += 2 * tm_ * tn_ * o_item      # output
        if acc_:
            n += tm_ * tn_ * 4           # f32 accumulator scratch
        return n

    # --- tile selection -----------------------------------------------------
    tm_target = 1024 if M >= 4096 else 512
    tm = M if M <= tm_target else tm_target        # full dim or 8-aligned target
    tn = V_pad if V_pad <= 512 else 512            # 256-aligned (good for 2x256 MXU)

    tk = E
    use_acc = False
    if _need(tm, tn, tk, False) > budget:
        # Shrink tm first: keeps the [E, tn] weight slab resident across the M loop.
        while tm > 256 and _need(tm, tn, tk, False) > budget:
            tm = max(256, tm // 2)
        if _need(tm, tn, tk, False) > budget:
            # Fall back to lane-aligned K chunking with an f32 accumulator.
            new_tk = _pick_tk(E)
            if new_tk < E:
                tk = new_tk
                use_acc = True
                while tm > 256 and _need(tm, tn, tk, True) > budget:
                    tm = max(256, tm // 2)
            # else: awkward E, keep a single (large) K step as best effort.

    # v7x has 2 TensorCores: keep >=2 blocks on a parallel axis when the work
    # is big enough to be worth sharding across them.
    grid_j = _cdiv(V_pad, tn)
    grid_i = _cdiv(M, tm)
    if grid_j == 1 and grid_i == 1 and (M * V_pad >= 512 * 512):
        if V_pad >= 512:
            tn = _round_up(_cdiv(V_pad, 2), 256)
        elif M >= 512:
            tm = _round_up(_cdiv(M, 2), 8)
        grid_j = _cdiv(V_pad, tn)
        grid_i = _cdiv(M, tm)

    # --- cost estimate (real per-stream traffic) -----------------------------
    act_bytes = grid_j * M * E * c_item
    wgt_restream = grid_i if use_acc else 1
    wgt_bytes = wgt_restream * E * V_pad * c_item
    out_bytes = M * V_pad * o_item
    cost = pl.CostEstimate(
        flops=2 * M * E * V_pad,
        transcendentals=0,
        bytes_accessed=act_bytes + wgt_bytes + out_bytes + V_pad * 4,
    )

    # --- grid / specs ---------------------------------------------------------
    if use_acc:
        grid = (grid_j, grid_i, E // tk)   # V tiles outer, M tiles, K innermost
        in_specs = [
            pl.BlockSpec((tm, tk), lambda j, i, k: (i, k)),   # activations
            pl.BlockSpec((tk, tn), lambda j, i, k: (k, j)),   # weight
            pl.BlockSpec((1, tn), lambda j, i, k: (0, j)),    # bias
        ]
        out_specs = pl.BlockSpec((tm, tn), lambda j, i, k: (i, j))
        scratch = [pltpu.VMEM((tm, tn), jnp.float32)]
        kernel = _linear_kernel_acc
        dims = ("parallel", "parallel", "arbitrary")
    else:
        grid = (grid_j, grid_i)            # V tiles outer: weight resident across M loop
        in_specs = [
            pl.BlockSpec((tm, tk), lambda j, i: (i, 0)),      # activations
            pl.BlockSpec((tk, tn), lambda j, i: (0, j)),      # weight (resident across i)
            pl.BlockSpec((1, tn), lambda j, i: (0, j)),       # bias
        ]
        out_specs = pl.BlockSpec((tm, tn), lambda j, i: (i, j))
        scratch = []
        kernel = _linear_kernel_fused
        dims = ("parallel", "parallel")

    out2d = pl.pallas_call(
        kernel,
        out_shape=jax.ShapeDtypeStruct((M, V_pad), out_dtype),
        grid_spec=pltpu.PrefetchScalarGridSpec(
            num_scalar_prefetch=0,
            grid=grid,
            in_specs=in_specs,
            out_specs=out_specs,
            scratch_shapes=scratch,
        ),
        compiler_params=pltpu.CompilerParams(
            dimension_semantics=dims,
            vmem_limit_bytes=vmem_limit,
        ),
        cost_estimate=cost,
    )(x2d, weight_t, bias2d)

    if V_pad != V:
        out2d = out2d[:, :V]
    return out2d.reshape(B, S, V)


if __name__ == "__main__":
    # Small shapes consistent with the module's forward.
    B, S = 2, 8
    embed_dims, vocab_size = 32, 128

    key = jax.random.PRNGKey(0)
    kx, kw, kb = jax.random.split(key, 3)

    x = jax.random.normal(kx, (B, S, embed_dims), dtype=jnp.float32)

    # Deterministic param init (PyTorch nn.Linear-like uniform bound).
    bound = 1.0 / (embed_dims ** 0.5)
    weight = jax.random.uniform(
        kw, (vocab_size, embed_dims), minval=-bound, maxval=bound, dtype=jnp.float32
    )
    bias = jax.random.uniform(
        kb, (vocab_size,), minval=-bound, maxval=bound, dtype=jnp.float32
    )

    # One-time layout / dtype conversion (at "init", not per forward call).
    params = prepare_params(weight, bias)
    jax.block_until_ready(params["weight_t"])
    jax.block_until_ready(params["bias"])

    out = jax.block_until_ready(fine_predictor_forward(x, params))
    assert out.shape == (B, S, vocab_size)
    assert out.dtype == x.dtype

    # Reference 1: same bf16 compute as the kernel (bf16 operands, f32 accumulate,
    # f32 bias add) — tight tolerance.
    ref_bf16 = (
        jnp.dot(
            x.reshape(-1, embed_dims).astype(jnp.bfloat16),
            weight.T.astype(jnp.bfloat16),
            preferred_element_type=jnp.float32,
        )
        + bias
    ).reshape(B, S, vocab_size)
    assert jnp.allclose(out, ref_bf16, atol=1e-3, rtol=1e-3), float(
        jnp.max(jnp.abs(out - ref_bf16))
    )

    # Reference 2: full-f32 nn.Linear semantics — bf16-sized tolerance.
    ref_f32 = x @ weight.T + bias
    assert jnp.allclose(out, ref_f32, atol=3e-2, rtol=3e-2), float(
        jnp.max(jnp.abs(out - ref_f32))
    )

    print("KERNEL_OK")
</pallas_src>

<mosaic_0001>
module attributes {stable_mosaic.version = 11 : i64} {
  func.func @_linear_kernel_fused(%arg0: i32, %arg1: i32, %arg2: memref<16x32xbf16, #tpu.memory_space<vmem>>, %arg3: memref<32x128xbf16, #tpu.memory_space<vmem>>, %arg4: memref<1x128xf32, #tpu.memory_space<vmem>>, %arg5: memref<16x128xf32, #tpu.memory_space<vmem>>) attributes {dimension_semantics = [#tpu.dimension_semantics<parallel>, #tpu.dimension_semantics<parallel>], iteration_bounds = array<i64: 1, 1>, scalar_prefetch = 0 : i64, scratch_operands = 0 : i64, tpu.core_type = #tpu.core_type<tc>, window_params = [{transform_indices = @transform_0, window_bounds = array<i64: 16, 32>}, {transform_indices = @transform_1, window_bounds = array<i64: 32, 128>}, {transform_indices = @transform_2, window_bounds = array<i64: 1, 128>}, {transform_indices = @transform_3, window_bounds = array<i64: 16, 128>}]} {
    %c0 = arith.constant 0 : index
    %c0_0 = arith.constant 0 : index
    %0 = vector.load %arg2[%c0, %c0_0] : memref<16x32xbf16, #tpu.memory_space<vmem>>, vector<16x32xbf16>
    %c0_1 = arith.constant 0 : index
    %c0_2 = arith.constant 0 : index
    %1 = vector.load %arg3[%c0_1, %c0_2] : memref<32x128xbf16, #tpu.memory_space<vmem>>, vector<32x128xbf16>
    %cst = arith.constant dense<0.000000e+00> : vector<16x128xf32>
    %2 = tpu.matmul %0, %1, %cst {dimension_numbers = #tpu.dot_dimension_numbers<[1], [0], [0], [1], [0, 0, 1, 1], [], []>} : vector<16x32xbf16>, vector<32x128xbf16>, vector<16x128xf32> -> vector<16x128xf32>
    %c0_3 = arith.constant 0 : index
    %c0_4 = arith.constant 0 : index
    %3 = vector.load %arg4[%c0_3, %c0_4] : memref<1x128xf32, #tpu.memory_space<vmem>>, vector<1x128xf32>
    %4 = vector.broadcast %3 : vector<1x128xf32> to vector<16x128xf32>
    %5 = arith.addf %2, %4 : vector<16x128xf32>
    %c0_5 = arith.constant 0 : index
    %c0_6 = arith.constant 0 : index
    %6 = vector.load %arg5[%c0_5, %c0_6] : memref<16x128xf32, #tpu.memory_space<vmem>>, vector<16x128xf32>
    tpu.vector_store %arg5[%c0_5, %c0_6], %5 {strides = array<i32>} : memref<16x128xf32, #tpu.memory_space<vmem>>, vector<16x128xf32>,
    return
  }
  func.func @transform_0(%arg0: i32, %arg1: i32) -> (i32, i32) {
    %c0_i32 = arith.constant 0 : i32
    %c0_i32_0 = arith.constant 0 : i32
    return %arg1, %c0_i32 : i32, i32
  }
  func.func @transform_1(%arg0: i32, %arg1: i32) -> (i32, i32) {
    %c0_i32 = arith.constant 0 : i32
    %c0_i32_0 = arith.constant 0 : i32
    return %c0_i32, %arg0 : i32, i32
  }
  func.func @transform_2(%arg0: i32, %arg1: i32) -> (i32, i32) {
    %c0_i32 = arith.constant 0 : i32
    %c0_i32_0 = arith.constant 0 : i32
    return %c0_i32, %arg0 : i32, i32
  }
  func.func @transform_3(%arg0: i32, %arg1: i32) -> (i32, i32) {
    %c0_i32 = arith.constant 0 : i32
    return %arg1, %arg0 : i32, i32
  }
}

</mosaic_0001>

<llo_original>
// kernel: tpu_custom_call.1
$region0: #{tpu_custom_call.1}
  #allocation0 [shape = 'u32[]', space=smem, size = 0x4, offset = 0x4, fixed_abs, tag = 'smem constant byte address 0x4 - core index']
  #allocation1 [shape = 'u32[72,128]{1,0:T(1,128)}', space=vmem, size = 0x9000, scoped, tag = 'internal scratch']
  %s0 = inlined_call_operand.hbm [shape: bf16[16,32], index: 0, kind: input, shape index: {}]
  %s1 = inlined_call_operand.hbm [shape: bf16[32,128], index: 1, kind: input, shape index: {}]
  %s2 = inlined_call_operand.vmem [shape: f32[1,128], index: 2, kind: input, shape index: {}]
  %s3 = inlined_call_operand.hbm [shape: f32[16,128], index: 3, kind: output, shape index: {}]
  %s4 = sld [smem:[#allocation0]]
  $region30: #{tpu_custom_call.1} parent=0
    _
  %s6 = ssub.s32 1, %s4
  %s7 = scalar_select 0, %s6, %s4
  $region1: #{tpu_custom_call.1} parent=0
    #allocation2 [shape = 'u8[4096]{0}', space=vmem, size = 0x1000, scoped, tag = 'input window, operand 0, single buffered']
    #allocation3 [shape = 's32[1]{0}', space=sflag, size = 0x4, scoped, tag = 'scoped memory for tpu_custom_call.1']
    #allocation4 [shape = 's32[1]{0}', space=sflag, size = 0x4, scoped, tag = 'scoped memory for tpu_custom_call.1']
    #allocation5 [shape = 'u8[8192]{0}', space=vmem, size = 0x2000, scoped, tag = 'input window, operand 1, single buffered']
    #allocation6 [shape = 's32[1]{0}', space=sflag, size = 0x4, scoped, tag = 'scoped memory for tpu_custom_call.1']
    #allocation7 [shape = 'u8[8192]{0}', space=vmem, size = 0x2000, scoped, tag = 'output window, operand 0, single buffered']
    %8 = vsyncpa [#allocation3], 0
    %9 = vsyncpa [#allocation6], 0
    %10 = vsyncpa [#allocation4], 0
    // Predicated region
    $region2: #{tpu_custom_call.1} parent=1 // pred_check
      _
    $region3: #{tpu_custom_call.1} parent=1 // pred_check_branch
      %12 = sbr.rel (0) target = $region5
    $region4: #{tpu_custom_call.1} parent=1 // pred_region
      %14 = vsyncadd [#allocation3], 0
      %s15 = sshll.u32 %s0, 4
      %s16 = int_to_ptr.hbm [resolvable:$true] %s15
      %s17 = sshll.u32 [#allocation2], 4
      %s18 = int_to_ptr.vmem [resolvable:$true] %s17
      %23 = dma.hbm_to_vmem [thread:$0]  %s16, 128, %s18, [#allocation3], 64, 64, 4
    $region5: #{tpu_custom_call.1} parent=1 // pred_fallthru
      _
    // Predicated region
    $region6: #{tpu_custom_call.1} parent=1 // pred_check
      _
    $region7: #{tpu_custom_call.1} parent=1 // pred_check_branch
      %25 = sbr.rel (0) target = $region9
    $region8: #{tpu_custom_call.1} parent=1 // pred_region
      %27 = vsyncadd [#allocation6], 0
      %s28 = sshll.u32 %s1, 4
      %s29 = int_to_ptr.hbm [resolvable:$true] %s28
      %s30 = sshll.u32 [#allocation5], 4
      %s31 = int_to_ptr.vmem [resolvable:$true] %s30
      %36 = dma.hbm_to_vmem [thread:$0]  %s29, 256, %s31, [#allocation6], 64, 64, 4
    $region9: #{tpu_custom_call.1} parent=1 // pred_fallthru
      _
    // Predicated region
    $region10: #{tpu_custom_call.1} parent=1 // pred_check
      _
    $region11: #{tpu_custom_call.1} parent=1 // pred_check_branch
      %38 = sbr.rel (0) target = $region13
    $region12: #{tpu_custom_call.1} parent=1 // pred_region
      _
    $region13: #{tpu_custom_call.1} parent=1 // pred_fallthru
      _
    // Predicated region
    $region14: #{tpu_custom_call.1} parent=1 // pred_check
      _
    $region15: #{tpu_custom_call.1} parent=1 // pred_check_branch
      %40 = sbr.rel (0) target = $region17
    $region16: #{tpu_custom_call.1} parent=1 // pred_region
      %42 = dma.done [#allocation3], 128
    $region17: #{tpu_custom_call.1} parent=1 // pred_fallthru
      _
    // Predicated region
    $region18: #{tpu_custom_call.1} parent=1 // pred_check
      _
    $region19: #{tpu_custom_call.1} parent=1 // pred_check_branch
      %44 = sbr.rel (0) target = $region21
    $region20: #{tpu_custom_call.1} parent=1 // pred_region
      %46 = dma.done [#allocation6], 256
    $region21: #{tpu_custom_call.1} parent=1 // pred_fallthru
      _
    %v48 = vld [vmem:[#allocation2] sm:$0xf]
    %v49 = vld [vmem:[#allocation2 + $0x4] sm:$0xf]
    %v50 = vld [vmem:[#allocation5] sm:$0xf]
    %v51 = vld [vmem:[#allocation5 + $0x4] sm:$0xf]
    %v52 = vld [vmem:[#allocation5 + $0x8] sm:$0xf]
    %v53 = vld [vmem:[#allocation5 + $0xc] sm:$0xf]
    %v54 = vld [vmem:[%s2] sm:$0x1]
    %v56 = vperm.slane %v54, 0
    %v60 = vunpack.c.l.b16 %v48
    %v61 = vunpack.c.l.b16 %v49
    %v62 = vpack.c.b16 %v61, %v60
    %v67 = vunpack.c.l.b16 %v50
    %v68 = vunpack.c.l.b16 %v51
    %v69 = vunpack.c.l.b16 %v52
    %v70 = vunpack.c.l.b16 %v53
    %v71 = vpack.c.b16 %v68, %v67
    %v72 = vpack.c.b16 %v70, %v69
    %vm75 = vcmask 261120
    %v77 = vsel %vm75, %v62, 0
    %79 = vmatpush.bf16.msra.mxu0 0
    %80 = vmatpush.bf16.msra.mxu0 0
    %81 = vmatpush.bf16.msra.mxu0 0
    %82 = vmatpush.bf16.msra.mxu0 0
    %83 = vmatpush.bf16.msra.mxu0 0
    %84 = vmatpush.bf16.msra.mxu0 0
    %85 = vmatpush.bf16.msra.mxu0 %v72
    %86 = vmatpush.bf16.msra.mxu0 %v71
    %87 = vmatmul.bf16.gmra.mxu0 %v77
    %v88 = vpop.f32.mrf.mxu0
    %v89 = vadd.f32 %v56, %v88
    %v90 = vpop.f32.mrf.mxu0
    %v91 = vadd.f32 %v56, %v90
    %92 = vdwg.mxu0
    %93 = vst [vmem:[#allocation7] sm:$0xff] %v89
    %94 = vst [vmem:[#allocation7 + $0x8] sm:$0xff] %v91
    // Predicated region
    $region22: #{tpu_custom_call.1} parent=1 // pred_check
      _
    $region23: #{tpu_custom_call.1} parent=1 // pred_check_branch
      %96 = sbr.rel (0) target = $region25
    $region24: #{tpu_custom_call.1} parent=1 // pred_region
      %98 = vsyncadd [#allocation4], 0
      %s99 = sshll.u32 [#allocation7], 4
      %s100 = int_to_ptr.vmem [resolvable:$true] %s99
      %s101 = sshll.u32 %s3, 4
      %s102 = int_to_ptr.hbm [resolvable:$true] %s101
      %107 = dma.vmem_to_hbm [thread:$0]  %s100, 256, %s102, [#allocation4], 128, 128, 8
    $region25: #{tpu_custom_call.1} parent=1 // pred_fallthru
      _
    // Predicated region
    $region26: #{tpu_custom_call.1} parent=1 // pred_check
      _
    $region27: #{tpu_custom_call.1} parent=1 // pred_check_branch
      %109 = sbr.rel (0) target = $region29
    $region28: #{tpu_custom_call.1} parent=1 // pred_region
      %111 = dma.done [#allocation4], 256
    $region29: #{tpu_custom_call.1} parent=1 // pred_fallthru
      _
    %112 = vsyncpa [#allocation3], 1
    %113 = vsyncpa [#allocation6], 1
    %114 = vsyncpa [#allocation4], 1

</llo_original>
